<compile_context>
chip_gen: v5e
topology: v5e:2x2
jax: 0.10.0
libtpu: 0.0.40
codegen_flags: <defaults>
</compile_context>

<pallas_src>
import jax
import jax.numpy as jnp
from jax.experimental import pallas as pl
from jax.experimental.pallas import tpu as pltpu


def _round_up(x, m):
    return (x + m - 1) // m * m


_ROLL_MATCHES_JNP = None


def _roll_matches_jnp():
    """One-time probe of pltpu.roll's rotation direction (tiny pallas_call).

    The conv shifts are static Python ints; probing the convention once makes
    the flat-space shift direction correct under either rotation convention.
    """
    global _ROLL_MATCHES_JNP
    if _ROLL_MATCHES_JNP is None:
        def probe(x_ref, o_ref):
            o_ref[...] = pltpu.roll(x_ref[...], shift=1, axis=1)

        x = jnp.broadcast_to(jnp.arange(128, dtype=jnp.float32), (8, 128))
        y = pl.pallas_call(
            probe,
            out_shape=jax.ShapeDtypeStruct((8, 128), jnp.float32),
        )(x)
        # jnp.roll convention: out[0] == in[-1] == 127
        _ROLL_MATCHES_JNP = bool(jax.device_get(y[0, 0]) == 127.0)
    return _ROLL_MATCHES_JNP


def _make_kernel(shifts_by_chunk, Cpad, Lx, S, eps):
    inv_s = 1.0 / float(S)

    def kernel(x_ref, w_ref, m_ref, o_ref, p_ref, acc_ref):
        # x_ref  : (Cpad, Lx)      bf16, zero-padded flattened input volume
        # w_ref  : (kD, Cout, CK)  bf16, CK = kH*kW*Cpad rows in (kh, kw, c)
        # m_ref  : (Lx, 1)         f32 mask column (1.0 at valid origins)
        # o_ref  : (Cout, Lx)      f32 output
        # p_ref  : (CK, Lx)        bf16 scratch: one kd-plane of im2col rows
        # acc_ref: (Cout, Lx)      f32 accumulator
        xv = x_ref[...]

        # Chunked im2col + accumulate: per kd-plane, build the shifted copies
        # with XLU lane rotations (tile-aligned 8-row bf16 stores), then one
        # bf16 MXU contraction accumulated in f32.
        for kd, chunk_shifts in enumerate(shifts_by_chunk):
            for t, s in enumerate(chunk_shifts):
                if s == 0:
                    p_ref[t * Cpad:(t + 1) * Cpad, :] = xv
                else:
                    p_ref[t * Cpad:(t + 1) * Cpad, :] = pltpu.roll(
                        xv, shift=s, axis=1)
            partial = jnp.dot(w_ref[kd], p_ref[...],
                              preferred_element_type=jnp.float32)
            if kd == 0:
                acc_ref[...] = partial
            else:
                acc_ref[...] += partial

        acc = acc_ref[...]                                   # (Cout, Lx) f32

        # InstanceNorm3d stats over the S valid output positions, computed as
        # tiny MXU matmuls against the mask column (masking folded in).
        # Conv bias cancels under the mean subtraction, so it is not applied.
        mcol = m_ref[...]                                    # (Lx, 1) f32
        mean = jnp.dot(acc, mcol,
                       preferred_element_type=jnp.float32) * inv_s   # (Cout,1)
        mean_sq = jnp.dot(acc * acc, mcol,
                          preferred_element_type=jnp.float32) * inv_s
        var = jnp.maximum(mean_sq - mean * mean, 0.0)
        y = (acc - mean) * jax.lax.rsqrt(var + eps)
        # Dropout3d -> eval-mode identity; ReLU:
        o_ref[...] = jnp.maximum(y, 0.0).astype(o_ref.dtype)

    return kernel


def conv_in_relu_3d(x_ncdhw, weight, bias, *, stride=1, padding=0, eps=1e-5):
    """Forward pass of _ConvINReLU3D.

    x_ncdhw : (N, Cin, D, H, W)        PyTorch NCDHW layout
    weight  : (kD, kH, kW, Cin, Cout)
    bias    : (Cout,)   -- accepted for interface parity; it cancels exactly
                           under InstanceNorm's per-channel mean subtraction
                           (affine=False), so it is not passed to the kernel.
    returns : (N, Cout, Do, Ho, Wo) float32
    """
    del bias  # cancels under InstanceNorm3d (affine=False)

    N, Cin, D, H, W = x_ncdhw.shape
    kD, kH, kW, Cin_w, Cout = weight.shape
    assert Cin == Cin_w

    Dp, Hp, Wp = D + 2 * padding, H + 2 * padding, W + 2 * padding
    Do = (Dp - kD) // stride + 1
    Ho = (Hp - kH) // stride + 1
    Wo = (Wp - kW) // stride + 1
    S = Do * Ho * Wo

    Cpad = _round_up(Cin, 8)              # sublane-aligned channel rows
    Lfull = Dp * Hp * Wp
    Lx = _round_up(Lfull, 128)            # lane-aligned flat spatial length
    CK = kH * kW * Cpad                   # im2col rows per kd-plane chunk

    # Wrap-safety: valid origins must never read rolled-around lanes.
    last_origin = ((Do - 1) * stride * Hp * Wp
                   + (Ho - 1) * stride * Wp + (Wo - 1) * stride)
    max_offset = (kD - 1) * Hp * Wp + (kH - 1) * Wp + (kW - 1)
    assert last_origin + max_offset < Lx, "roll-wrap would corrupt valid lanes"

    # ---- wrapper-side layout prep (cheap XLA ops, no transposes back) ----
    xp = jnp.pad(x_ncdhw, ((0, 0), (0, Cpad - Cin),
                           (padding, padding), (padding, padding),
                           (padding, padding)))
    xf = xp.reshape(N, Cpad, Lfull)                     # row-major: free
    xf = jnp.pad(xf, ((0, 0), (0, 0), (0, Lx - Lfull)))
    xf = xf.astype(jnp.bfloat16)                        # bf16 staging input

    # weight -> (kD, Cout, CK), CK ordered (kh, kw, cin), zero-padded channels.
    wpd = jnp.pad(weight, ((0, 0), (0, 0), (0, 0), (0, Cpad - Cin), (0, 0)))
    w3d = jnp.transpose(wpd, (0, 4, 1, 2, 3)).reshape(kD, Cout, CK)
    w3d = w3d.astype(jnp.bfloat16)

    # mask column of valid (strided) output origins in flat padded coords.
    vd = (jnp.arange(Dp) % stride == 0) & (jnp.arange(Dp) // stride < Do)
    vh = (jnp.arange(Hp) % stride == 0) & (jnp.arange(Hp) // stride < Ho)
    vw = (jnp.arange(Wp) % stride == 0) & (jnp.arange(Wp) // stride < Wo)
    m3 = vd[:, None, None] & vh[None, :, None] & vw[None, None, :]
    mask_col = jnp.pad(m3.reshape(Lfull, 1).astype(jnp.float32),
                       ((0, Lx - Lfull), (0, 0)))

    # static flat-space shift per conv tap, grouped by kd-plane chunk
    # (valid outputs never wrap; asserted above).
    roll_fwd = _roll_matches_jnp()
    shifts_by_chunk = []
    for kd in range(kD):
        chunk = []
        for kh in range(kH):
            for kw in range(kW):
                o = kd * Hp * Wp + kh * Wp + kw
                chunk.append((Lx - o) % Lx if roll_fwd else o % Lx)
        shifts_by_chunk.append(tuple(chunk))

    kernel = _make_kernel(tuple(shifts_by_chunk), Cpad, Lx, S, eps)

    # Explicit scoped-VMEM budget: double-buffered operands + scratch + slack.
    in_bytes = Cpad * Lx * 2 + kD * Cout * CK * 2 + Lx * 4
    out_bytes = Cout * Lx * 4
    scratch_bytes = CK * Lx * 2 + Cout * Lx * 4
    vmem_limit = min(int(2 * (in_bytes + out_bytes) + scratch_bytes
                         + (8 << 20)), 100 << 20)

    K = kD * CK
    cost = pl.CostEstimate(
        flops=int(N * (2 * Cout * K * Lx + 4 * Cout * Lx + 8 * Cout * Lx)),
        transcendentals=int(N * Cout),
        bytes_accessed=int(2 * N * Cpad * Lx + 2 * kD * Cout * CK
                           + 4 * Lx + 4 * N * Cout * Lx),
    )

    out_flat = pl.pallas_call(
        kernel,
        out_shape=jax.ShapeDtypeStruct((N, Cout, Lx), jnp.float32),
        grid_spec=pltpu.PrefetchScalarGridSpec(
            num_scalar_prefetch=0,
            grid=(N,),
            in_specs=[
                pl.BlockSpec((pl.Squeezed(), Cpad, Lx), lambda n: (n, 0, 0)),
                pl.BlockSpec((kD, Cout, CK), lambda n: (0, 0, 0)),
                pl.BlockSpec((Lx, 1), lambda n: (0, 0)),
            ],
            out_specs=pl.BlockSpec((pl.Squeezed(), Cout, Lx),
                                   lambda n: (n, 0, 0)),
            scratch_shapes=[pltpu.VMEM((CK, Lx), jnp.bfloat16),
                            pltpu.VMEM((Cout, Lx), jnp.float32)],
        ),
        compiler_params=pltpu.CompilerParams(
            dimension_semantics=("parallel",),
            vmem_limit_bytes=vmem_limit),
        cost_estimate=cost,
    )(xf, w3d, mask_col)

    # Lane-dense, NC-major output: slice the valid strided positions, no
    # transpose needed.
    out = out_flat[:, :, :Lfull].reshape(N, Cout, Dp, Hp, Wp)
    out = out[:, :,
              0:(Do - 1) * stride + 1:stride,
              0:(Ho - 1) * stride + 1:stride,
              0:(Wo - 1) * stride + 1:stride]
    return out


if __name__ == "__main__":
    # Module config: _ConvINReLU3D(in_channels=4, out_channels=8,
    #                              kernel_size=3, stride=1, padding=1, p=0.2)
    N, Cin, Cout = 2, 4, 8
    D = H = W = 8
    k, stride, padding = 3, 1, 1

    key = jax.random.PRNGKey(0)
    kx, kw, kb = jax.random.split(key, 3)

    x = jax.random.normal(kx, (N, Cin, D, H, W), dtype=jnp.float32)
    fan_in = Cin * k * k * k
    weight = jax.random.normal(kw, (k, k, k, Cin, Cout),
                               dtype=jnp.float32) * (fan_in ** -0.5)
    bias = jax.random.normal(kb, (Cout,), dtype=jnp.float32) * 0.01

    out = jax.block_until_ready(
        conv_in_relu_3d(x, weight, bias, stride=stride, padding=padding))

    # Plain-JAX f32 reference for a correctness check (kernel stages the
    # conv in bf16 with f32 accumulation, so use a bf16-appropriate tol).
    w_oidhw = jnp.transpose(weight, (4, 3, 0, 1, 2))  # (Cout, Cin, kD, kH, kW)
    conv = jax.lax.conv_general_dilated(
        x, w_oidhw, window_strides=(stride,) * 3,
        padding=[(padding, padding)] * 3,
        dimension_numbers=("NCDHW", "OIDHW", "NCDHW"))
    conv = conv + bias.reshape(1, Cout, 1, 1, 1)
    mean = conv.mean(axis=(2, 3, 4), keepdims=True)
    var = ((conv - mean) ** 2).mean(axis=(2, 3, 4), keepdims=True)
    ref = jnp.maximum((conv - mean) * jax.lax.rsqrt(var + 1e-5), 0.0)

    assert out.shape == ref.shape == (N, Cout, D, H, W)
    max_err = float(jnp.max(jnp.abs(out - ref)))
    assert jnp.allclose(out, ref, atol=5e-2, rtol=5e-2), max_err
    print("KERNEL_OK")
</pallas_src>

<mosaic_0001>
module attributes {stable_mosaic.version = 11 : i64} {
  func.func @probe(%arg0: memref<8x128xf32, #tpu.memory_space<vmem>>, %arg1: memref<8x128xf32, #tpu.memory_space<vmem>>) attributes {dimension_semantics = [], scalar_prefetch = 0 : i64, scratch_operands = 0 : i64, tpu.core_type = #tpu.core_type<tc>} {
    %c0 = arith.constant 0 : index
    %c0_0 = arith.constant 0 : index
    %0 = vector.load %arg0[%c0, %c0_0] : memref<8x128xf32, #tpu.memory_space<vmem>>, vector<8x128xf32>
    %c1_i32 = arith.constant 1 : i32
    %1 = tpu.dynamic_rotate %0 by %c1_i32 dim 1 : vector<8x128xf32>, i32 -> vector<8x128xf32>
    %c0_1 = arith.constant 0 : index
    %c0_2 = arith.constant 0 : index
    %2 = vector.load %arg1[%c0_1, %c0_2] : memref<8x128xf32, #tpu.memory_space<vmem>>, vector<8x128xf32>
    tpu.vector_store %arg1[%c0_1, %c0_2], %1 {strides = array<i32>} : memref<8x128xf32, #tpu.memory_space<vmem>>, vector<8x128xf32>,
    return
  }
}

</mosaic_0001>

<llo_original>
// kernel: tpu_custom_call.1
$region0: #{tpu_custom_call.1}
  #allocation0 [shape = 'u32[]', space=smem, size = 0x4, offset = 0x4, fixed_abs, tag = 'smem constant byte address 0x4 - core index']
  #allocation1 [shape = 'u32[72,128]{1,0:T(1,128)}', space=vmem, size = 0x9000, scoped, tag = 'internal scratch']
  %s0 = inlined_call_operand.hbm [shape: f32[8,128], index: 0, kind: input, shape index: {}]
  %s1 = inlined_call_operand.hbm [shape: f32[8,128], index: 1, kind: output, shape index: {}]
  %s2 = sld [smem:[#allocation0]]
  $region18: #{tpu_custom_call.1} parent=0
    _
  %s4 = ssub.s32 1, %s2
  %s5 = scalar_select 0, %s4, %s2
  $region1: #{tpu_custom_call.1} parent=0
    #allocation2 [shape = 'u8[4096]{0}', space=vmem, size = 0x1000, scoped, tag = 'input window, operand 0, single buffered']
    #allocation3 [shape = 's32[1]{0}', space=sflag, size = 0x4, scoped, tag = 'scoped memory for tpu_custom_call.1']
    #allocation4 [shape = 's32[1]{0}', space=sflag, size = 0x4, scoped, tag = 'scoped memory for tpu_custom_call.1']
    #allocation5 [shape = 'u8[4096]{0}', space=vmem, size = 0x1000, scoped, tag = 'output window, operand 0, single buffered']
    %6 = vsyncpa [#allocation3], 0
    %7 = vsyncpa [#allocation4], 0
    // Predicated region
    $region2: #{tpu_custom_call.1} parent=1 // pred_check
      _
    $region3: #{tpu_custom_call.1} parent=1 // pred_check_branch
      %9 = sbr.rel (0) target = $region5
    $region4: #{tpu_custom_call.1} parent=1 // pred_region
      %11 = vsyncadd [#allocation3], 0
      %s13 = sshll.u32 %s0, 4
      %s14 = int_to_ptr.hbm [resolvable:$true] %s13
      %s15 = sshll.u32 [#allocation2], 4
      %s16 = int_to_ptr.vmem [resolvable:$true] %s15
      %18 = dma.hbm_to_vmem [thread:$0]  %s14, 128, %s16, [#allocation3]
    $region5: #{tpu_custom_call.1} parent=1 // pred_fallthru
      _
    // Predicated region
    $region6: #{tpu_custom_call.1} parent=1 // pred_check
      _
    $region7: #{tpu_custom_call.1} parent=1 // pred_check_branch
      %20 = sbr.rel (0) target = $region9
    $region8: #{tpu_custom_call.1} parent=1 // pred_region
      %22 = dma.done [#allocation3], 128
    $region9: #{tpu_custom_call.1} parent=1 // pred_fallthru
      _
    %v23 = vld [vmem:[#allocation2] sm:$0xff]
    %24 = vrot.lane.b32.xlu0 %v23, 1
    %v25 = vpop.permute.xlu0 %24
    %26 = vst [vmem:[#allocation5] sm:$0xff] %v25
    // Predicated region
    $region10: #{tpu_custom_call.1} parent=1 // pred_check
      _
    $region11: #{tpu_custom_call.1} parent=1 // pred_check_branch
      %28 = sbr.rel (0) target = $region13
    $region12: #{tpu_custom_call.1} parent=1 // pred_region
      %30 = vsyncadd [#allocation4], 0
      %s32 = sshll.u32 [#allocation5], 4
      %s33 = int_to_ptr.vmem [resolvable:$true] %s32
      %s34 = sshll.u32 %s1, 4
      %s35 = int_to_ptr.hbm [resolvable:$true] %s34
      %37 = dma.vmem_to_hbm [thread:$0]  %s33, 128, %s35, [#allocation4]
    $region13: #{tpu_custom_call.1} parent=1 // pred_fallthru
      _
    // Predicated region
    $region14: #{tpu_custom_call.1} parent=1 // pred_check
      _
    $region15: #{tpu_custom_call.1} parent=1 // pred_check_branch
      %39 = sbr.rel (0) target = $region17
    $region16: #{tpu_custom_call.1} parent=1 // pred_region
      %41 = dma.done [#allocation4], 128
    $region17: #{tpu_custom_call.1} parent=1 // pred_fallthru
      _
    %42 = vsyncpa [#allocation3], 1
    %43 = vsyncpa [#allocation4], 1

</llo_original>
